<compile_context>
chip_gen: v5e
topology: v5e:2x2
jax: 0.10.0
libtpu: 0.0.40
codegen_flags: <defaults>
</compile_context>

<pallas_src>
import functools
import math

import jax
import jax.numpy as jnp
from jax.experimental import pallas as pl
from jax.experimental.pallas import tpu as pltpu


def _pos_embed_kernel(xyz_ref, w1_ref, eb1_ref, w2_ref, b2_ref, out_ref, *,
                      sub_rows, n_sub):
    """One (batch, N-tile) grid step.

    xyz_ref : (1, TR, 3*G)   G points packed per row
    w1_ref  : (3*G, G*H)     block-diagonal of w1[:3]
    eb1_ref : (1, 1, G*H)    per-batch bias = b1 + std@w1[3:6] + mean@w1[6:9], tiled G times
    w2_ref  : (G*H, G*C)     block-diagonal of w2
    b2_ref  : (1, G*C)       b2 tiled G times
    out_ref : (1, TR, G*C)   lane-dense output rows (G*C is a multiple of 128)

    The block (TR rows) is walked in `sub_rows` chunks so the in-kernel vector
    working set stays small even for very large DMA tiles.
    """
    @pl.loop(0, n_sub)
    def _(i):
        r0 = pl.multiple_of(i * sub_rows, sub_rows)
        x = xyz_ref[0, pl.ds(r0, sub_rows), :].astype(w1_ref.dtype)
        h = jnp.dot(x, w1_ref[...], preferred_element_type=jnp.float32)
        h = h + eb1_ref[0]                                              # (sub, G*H)
        h = jnp.where(h > 0, h, jnp.float32(0.01) * h)                  # LeakyReLU(0.01)
        o = jnp.dot(h.astype(w2_ref.dtype), w2_ref[...],
                    preferred_element_type=jnp.float32)
        o = o + b2_ref[...]                                             # (sub, G*C)
        out_ref[0, pl.ds(r0, sub_rows), :] = o.astype(out_ref.dtype)


def _round_up(x: int, m: int) -> int:
    return ((x + m - 1) // m) * m


def _physical_vmem_bytes() -> int:
    try:
        info = pltpu.get_tpu_info()
        v = getattr(info, "vmem_capacity_bytes", None)
        if v:
            return int(v)
    except Exception:
        pass
    return 64 * 1024 * 1024        # conservative default: v7x per-TensorCore VMEM


def _choose_tiling(rows_needed: int, budget_rows: int, target_rows: int,
                   batch: int, sub_rows_cap: int = 512):
    """Pick (tile_rows, sub_rows, rows_padded).

    tile_rows   : grouped rows per grid step (the DMA granule) -- as large as the
                  VMEM budget / target allows; multiple of sub_rows (itself a
                  multiple of 8, the sublane rule).
    rows_padded : rows after zero-padding so the grid divides evenly.
    """
    tile = min(budget_rows, target_rows, _round_up(rows_needed, 8))
    tile = max(8, _round_up(tile, 8))
    # Dual-TensorCore (v7x) / megacore: keep at least two parallel grid steps.
    if batch * (_round_up(rows_needed, tile) // tile) < 2 and rows_needed > 8:
        tile = max(8, _round_up((rows_needed + 1) // 2, 8))
    sub = min(tile, sub_rows_cap)
    if tile > sub:
        tile = max(sub, (tile // sub) * sub)
    rows_padded = _round_up(rows_needed, tile)
    return tile, sub, rows_padded


def simple_positional_embedding(xyz, w1, b1, w2, b2, *,
                                tn_target=65536, out_dtype=jnp.float32):
    """xyz: (B, N, 3); w1: (9, H); b1: (H,); w2: (H, C); b2: (C,) -> (B, N, C).

    NOTE: N == 1 yields NaN std (ddof=1), same as torch.std_mean(unbiased=True).
    tn_target = points per grid step; the default (64K) sits in the recommended
    range for all generations (v7x 32-64K, v6e 64-128K, v5e ~64K) and is further
    capped by a generation-aware VMEM budget. Pass out_dtype=jnp.bfloat16 to
    halve the dominant HBM write traffic (matmuls stay f32-accumulated).
    """
    xyz = xyz.astype(jnp.float32)
    B, N, _ = xyz.shape
    H = w1.shape[1]
    C = w2.shape[1]

    # --- per-batch stats folded into a per-batch effective bias (one XLA pass) ---
    mean = jnp.mean(xyz, axis=1)                          # (B, 3)
    std = jnp.std(xyz, axis=1, ddof=1)                    # (B, 3), unbiased (torch default)
    eff_b1 = std @ w1[3:6] + mean @ w1[6:9] + b1          # (B, H)
    w1a = w1[:3].astype(jnp.float32)                      # (3, H)

    # --- lane-dense grouping: smallest G with (G*C) % 128 == 0 (works for any C) ---
    G = 128 // math.gcd(C, 128)
    GH = G * H
    lane_out = G * C                                      # multiple of 128

    # For very small C the kron block-diagonal inflates MACs by G; bf16 operands
    # (f32 accumulation) keep the MXU rate ahead of HBM on v5e in that regime.
    mm_dtype = jnp.bfloat16 if G >= 16 else jnp.float32
    eye = jnp.eye(G, dtype=jnp.float32)
    w1_bd = jnp.kron(eye, w1a).astype(mm_dtype)                       # (3G, G*H)
    w2_bd = jnp.kron(eye, w2.astype(jnp.float32)).astype(mm_dtype)    # (G*H, G*C)
    eb1_g = jnp.tile(eff_b1, (1, G)).reshape(B, 1, GH)                # (B, 1, G*H)
    b2_g = jnp.tile(b2.astype(jnp.float32).reshape(1, C), (1, G))     # (1, G*C)

    # --- VMEM-budgeted, padding-based tiling -------------------------------------
    out_bytes = jnp.dtype(out_dtype).itemsize
    phys_vmem = _physical_vmem_bytes()
    # v7x (64 MiB): ~45 MB limit; v5e/v6e (128 MiB): ~94 MB limit.
    vmem_limit = min(int(0.70 * phys_vmem), 96 * 1024 * 1024)
    buffer_budget = int(0.75 * vmem_limit)   # rest: weights + Mosaic scratch/spills
    # Double-buffered pipeline cost per grouped row:
    #   input  (…, 3G) f32 block is lane-padded to 128 lanes in VMEM -> 512 B/row
    #   output (…, G*C) block is exactly lane-dense                  -> lane_out*out_bytes
    bytes_per_row = 2 * (128 * 4 + lane_out * out_bytes)
    budget_rows = max(8, (buffer_budget // bytes_per_row) // 8 * 8)

    rows_needed = -(-N // G)
    target_rows = max(8, tn_target // G)
    tile_rows, sub_rows, rows_pad = _choose_tiling(rows_needed, budget_rows,
                                                   target_rows, B)
    n_tiles = rows_pad // tile_rows
    N_pad = rows_pad * G

    if N_pad != N:
        xyz = jnp.pad(xyz, ((0, 0), (0, N_pad - N), (0, 0)))          # zero rows, sliced off below
    xyz_g = xyz.reshape(B, rows_pad, 3 * G)                           # free row-major view

    grid_spec = pltpu.PrefetchScalarGridSpec(
        num_scalar_prefetch=0,
        grid=(B, n_tiles),
        in_specs=[
            pl.BlockSpec((1, tile_rows, 3 * G), lambda b, n: (b, n, 0)),
            pl.BlockSpec((3 * G, GH), lambda b, n: (0, 0)),
            pl.BlockSpec((1, 1, GH), lambda b, n: (b, 0, 0)),
            pl.BlockSpec((GH, lane_out), lambda b, n: (0, 0)),
            pl.BlockSpec((1, lane_out), lambda b, n: (0, 0)),
        ],
        out_specs=pl.BlockSpec((1, tile_rows, lane_out), lambda b, n: (b, n, 0)),
    )

    # Cost estimate reflects actual kernel work (kron inflation factor G) + traffic.
    flops = 2 * B * N_pad * G * (3 * H + H * C)
    bytes_accessed = (B * N_pad * 3 * 4                              # input read
                      + B * N_pad * C * out_bytes                    # output write
                      + int(w1_bd.size + w2_bd.size) * jnp.dtype(mm_dtype).itemsize
                      + int(eb1_g.size + b2_g.size) * 4)
    cost = pl.CostEstimate(flops=flops, transcendentals=0,
                           bytes_accessed=bytes_accessed)

    kernel = functools.partial(_pos_embed_kernel, sub_rows=sub_rows,
                               n_sub=tile_rows // sub_rows)

    out_g = pl.pallas_call(
        kernel,
        out_shape=jax.ShapeDtypeStruct((B, rows_pad, lane_out), out_dtype),
        grid_spec=grid_spec,
        compiler_params=pltpu.CompilerParams(
            dimension_semantics=("parallel", "parallel"),
            vmem_limit_bytes=vmem_limit),
        cost_estimate=cost,
    )(xyz_g, w1_bd, eb1_g, w2_bd, b2_g)

    out = out_g.reshape(B, N_pad, C)                                  # free row-major view
    if N_pad != N:
        out = out[:, :N, :]
    return out


def _reference(xyz, w1, b1, w2, b2):
    mean = jnp.mean(xyz, axis=1, keepdims=True)
    std = jnp.std(xyz, axis=1, keepdims=True, ddof=1)
    pos = jnp.concatenate(
        [xyz, jnp.broadcast_to(std, xyz.shape), jnp.broadcast_to(mean, xyz.shape)],
        axis=-1)
    h = pos @ w1 + b1
    h = jnp.where(h > 0, h, 0.01 * h)
    return h @ w2 + b2


if __name__ == "__main__":
    channel = 32
    hidden = max(channel // 8, 16)   # = 16, matches nn.Linear(9, max(C//8, 16))

    key = jax.random.PRNGKey(0)
    k_x, k_w1, k_b1, k_w2, k_b2, k_x2, k_x3 = jax.random.split(key, 7)

    w1 = jax.random.normal(k_w1, (9, hidden), dtype=jnp.float32) * 0.1
    b1 = jax.random.normal(k_b1, (hidden,), dtype=jnp.float32) * 0.1
    w2 = jax.random.normal(k_w2, (hidden, channel), dtype=jnp.float32) * 0.1
    b2 = jax.random.normal(k_b2, (channel,), dtype=jnp.float32) * 0.1

    # 1) Small case: single N-tile per batch (grid = (B, 1)).
    B, N = 2, 8
    xyz = jax.random.normal(k_x, (B, N, 3), dtype=jnp.float32)
    out = jax.block_until_ready(simple_positional_embedding(xyz, w1, b1, w2, b2))
    ref = _reference(xyz, w1, b1, w2, b2)
    assert out.shape == (B, N, channel)
    assert jnp.allclose(out, ref, atol=1e-4, rtol=1e-4), "mismatch vs reference (small)"

    # 2) Tiled 2-D parallel grid (tiny tn_target -> 2 N-tiles per batch).
    B2, N2 = 2, 64
    xyz2 = jax.random.normal(k_x2, (B2, N2, 3), dtype=jnp.float32)
    out2 = jax.block_until_ready(
        simple_positional_embedding(xyz2, w1, b1, w2, b2, tn_target=32))
    ref2 = _reference(xyz2, w1, b1, w2, b2)
    assert out2.shape == (B2, N2, channel)
    assert jnp.allclose(out2, ref2, atol=1e-4, rtol=1e-4), "mismatch vs reference (tiled)"

    # 3) N not divisible by the packing factor or the tile -> pad-and-slice path.
    B3, N3 = 2, 37
    xyz3 = jax.random.normal(k_x3, (B3, N3, 3), dtype=jnp.float32)
    out3 = jax.block_until_ready(simple_positional_embedding(xyz3, w1, b1, w2, b2))
    ref3 = _reference(xyz3, w1, b1, w2, b2)
    assert out3.shape == (B3, N3, channel)
    assert jnp.allclose(out3, ref3, atol=1e-4, rtol=1e-4), "mismatch vs reference (padded)"

    # 4) bf16-output smoke test (halves the dominant HBM write traffic).
    out4 = jax.block_until_ready(
        simple_positional_embedding(xyz2, w1, b1, w2, b2, out_dtype=jnp.bfloat16))
    assert out4.shape == (B2, N2, channel) and out4.dtype == jnp.bfloat16
    assert bool(jnp.all(jnp.isfinite(out4.astype(jnp.float32))))

    print("KERNEL_OK")
</pallas_src>

<mosaic_0001>
module attributes {stable_mosaic.version = 11 : i64} {
  func.func @_pos_embed_kernel(%arg0: i32, %arg1: i32, %arg2: memref<1x8x12xf32, #tpu.memory_space<vmem>>, %arg3: memref<12x64xf32, #tpu.memory_space<vmem>>, %arg4: memref<1x1x64xf32, #tpu.memory_space<vmem>>, %arg5: memref<64x128xf32, #tpu.memory_space<vmem>>, %arg6: memref<1x128xf32, #tpu.memory_space<vmem>>, %arg7: memref<1x8x128xf32, #tpu.memory_space<vmem>>) attributes {dimension_semantics = [#tpu.dimension_semantics<parallel>, #tpu.dimension_semantics<parallel>], iteration_bounds = array<i64: 2, 1>, scalar_prefetch = 0 : i64, scratch_operands = 0 : i64, tpu.core_type = #tpu.core_type<tc>, window_params = [{transform_indices = @transform_0, window_bounds = array<i64: 1, 8, 12>}, {pipeline_mode = #tpu.pipeline_mode<synchronous>, transform_indices = @transform_1, window_bounds = array<i64: 12, 64>}, {transform_indices = @transform_2, window_bounds = array<i64: 1, 1, 64>}, {pipeline_mode = #tpu.pipeline_mode<synchronous>, transform_indices = @transform_3, window_bounds = array<i64: 64, 128>}, {pipeline_mode = #tpu.pipeline_mode<synchronous>, transform_indices = @transform_4, window_bounds = array<i64: 1, 128>}, {transform_indices = @transform_5, window_bounds = array<i64: 1, 8, 128>}]} {
    %c0_i32 = arith.constant 0 : i32
    %c1_i32 = arith.constant 1 : i32
    %0 = arith.muli %c0_i32, %c1_i32 : i32
    %c0_i32_0 = arith.constant 0 : i32
    %1 = arith.addi %c0_i32_0, %0 : i32
    %c8_i32 = arith.constant 8 : i32
    %2 = arith.muli %1, %c8_i32 : i32
    %3 = tpu.assume_multiple %2, 8 : i32
    %c0 = arith.constant 0 : index
    %4 = arith.index_cast %3 : i32 to index
    %c0_1 = arith.constant 0 : index
    %5 = vector.load %arg2[%c0, %4, %c0_1] : memref<1x8x12xf32, #tpu.memory_space<vmem>>, vector<1x8x12xf32>
    %6 = vector.shape_cast %5 : vector<1x8x12xf32> to vector<8x12xf32>
    %c0_2 = arith.constant 0 : index
    %c0_3 = arith.constant 0 : index
    %7 = vector.load %arg3[%c0_2, %c0_3] : memref<12x64xf32, #tpu.memory_space<vmem>>, vector<12x64xf32>
    %cst = arith.constant dense<0.000000e+00> : vector<8x64xf32>
    %8 = tpu.matmul %6, %7, %cst {dimension_numbers = #tpu.dot_dimension_numbers<[1], [0], [0], [1], [0, 0, 1, 1], [], []>} : vector<8x12xf32>, vector<12x64xf32>, vector<8x64xf32> -> vector<8x64xf32>
    %c0_4 = arith.constant 0 : index
    %c0_5 = arith.constant 0 : index
    %c0_6 = arith.constant 0 : index
    %9 = vector.load %arg4[%c0_4, %c0_5, %c0_6] : memref<1x1x64xf32, #tpu.memory_space<vmem>>, vector<1x1x64xf32>
    %10 = vector.shape_cast %9 : vector<1x1x64xf32> to vector<1x64xf32>
    %11 = vector.broadcast %10 : vector<1x64xf32> to vector<8x64xf32>
    %12 = arith.addf %8, %11 : vector<8x64xf32>
    %cst_7 = arith.constant 0.000000e+00 : f32
    %13 = vector.broadcast %cst_7 : f32 to vector<8x64xf32>
    %14 = arith.cmpf ogt, %12, %13 : vector<8x64xf32>
    %cst_8 = arith.constant 0.00999999977 : f32
    %15 = vector.broadcast %cst_8 : f32 to vector<8x64xf32>
    %16 = arith.mulf %15, %12 : vector<8x64xf32>
    %17 = arith.select %14, %12, %16 : vector<8x64xi1>, vector<8x64xf32>
    %c0_9 = arith.constant 0 : index
    %c0_10 = arith.constant 0 : index
    %18 = vector.load %arg5[%c0_9, %c0_10] : memref<64x128xf32, #tpu.memory_space<vmem>>, vector<64x128xf32>
    %cst_11 = arith.constant dense<0.000000e+00> : vector<8x128xf32>
    %19 = tpu.matmul %17, %18, %cst_11 {dimension_numbers = #tpu.dot_dimension_numbers<[1], [0], [0], [1], [0, 0, 1, 1], [], []>} : vector<8x64xf32>, vector<64x128xf32>, vector<8x128xf32> -> vector<8x128xf32>
    %c0_12 = arith.constant 0 : index
    %c0_13 = arith.constant 0 : index
    %20 = vector.load %arg6[%c0_12, %c0_13] : memref<1x128xf32, #tpu.memory_space<vmem>>, vector<1x128xf32>
    %21 = vector.broadcast %20 : vector<1x128xf32> to vector<8x128xf32>
    %22 = arith.addf %19, %21 : vector<8x128xf32>
    %c0_14 = arith.constant 0 : index
    %23 = arith.index_cast %3 : i32 to index
    %c0_15 = arith.constant 0 : index
    %24 = vector.load %arg7[%c0_14, %23, %c0_15] : memref<1x8x128xf32, #tpu.memory_space<vmem>>, vector<1x8x128xf32>
    %25 = vector.shape_cast %24 : vector<1x8x128xf32> to vector<8x128xf32>
    %26 = vector.shape_cast %22 : vector<8x128xf32> to vector<1x8x128xf32>
    tpu.vector_store %arg7[%c0_14, %23, %c0_15], %26 {strides = array<i32>} : memref<1x8x128xf32, #tpu.memory_space<vmem>>, vector<1x8x128xf32>,
    %c1_i32_16 = arith.constant 1 : i32
    return
  }
  func.func @transform_0(%arg0: i32, %arg1: i32) -> (i32, i32, i32) {
    %c0_i32 = arith.constant 0 : i32
    %c0_i32_0 = arith.constant 0 : i32
    return %arg0, %arg1, %c0_i32 : i32, i32, i32
  }
  func.func @transform_1(%arg0: i32, %arg1: i32) -> (i32, i32) {
    %c0_i32 = arith.constant 0 : i32
    %c0_i32_0 = arith.constant 0 : i32
    %c0_i32_1 = arith.constant 0 : i32
    return %c0_i32, %c0_i32_0 : i32, i32
  }
  func.func @transform_2(%arg0: i32, %arg1: i32) -> (i32, i32, i32) {
    %c0_i32 = arith.constant 0 : i32
    %c0_i32_0 = arith.constant 0 : i32
    %c0_i32_1 = arith.constant 0 : i32
    return %arg0, %c0_i32, %c0_i32_0 : i32, i32, i32
  }
  func.func @transform_3(%arg0: i32, %arg1: i32) -> (i32, i32) {
    %c0_i32 = arith.constant 0 : i32
    %c0_i32_0 = arith.constant 0 : i32
    %c0_i32_1 = arith.constant 0 : i32
    return %c0_i32, %c0_i32_0 : i32, i32
  }
  func.func @transform_4(%arg0: i32, %arg1: i32) -> (i32, i32) {
    %c0_i32 = arith.constant 0 : i32
    %c0_i32_0 = arith.constant 0 : i32
    %c0_i32_1 = arith.constant 0 : i32
    return %c0_i32, %c0_i32_0 : i32, i32
  }
  func.func @transform_5(%arg0: i32, %arg1: i32) -> (i32, i32, i32) {
    %c0_i32 = arith.constant 0 : i32
    %c0_i32_0 = arith.constant 0 : i32
    return %arg0, %arg1, %c0_i32 : i32, i32, i32
  }
}

</mosaic_0001>

<llo_original>
// kernel: tpu_custom_call.1
$region0: #{tpu_custom_call.1}
  #allocation0 [shape = 'u32[]', space=smem, size = 0x4, offset = 0x4, fixed_abs, tag = 'smem constant byte address 0x4 - core index']
  #allocation1 [shape = 'u32[72,128]{1,0:T(1,128)}', space=vmem, size = 0x9000, scoped, tag = 'internal scratch']
  %s0 = inlined_call_operand.hbm [shape: f32[2,8,12], index: 0, kind: input, shape index: {}]
  %s1 = inlined_call_operand.hbm [shape: f32[12,64], index: 1, kind: input, shape index: {}]
  %s2 = inlined_call_operand.hbm [shape: f32[2,1,64], index: 2, kind: input, shape index: {}]
  %s3 = inlined_call_operand.hbm [shape: f32[64,128], index: 3, kind: input, shape index: {}]
  %s4 = inlined_call_operand.vmem [shape: f32[1,128], index: 4, kind: input, shape index: {}]
  %s5 = inlined_call_operand.hbm [shape: f32[2,8,128], index: 5, kind: output, shape index: {}]
  %s6 = sld [smem:[#allocation0]]
  $region69: #{tpu_custom_call.1} parent=0
    _
  %s8 = ssub.s32 1, %s6
  %s9 = scalar_select 0, %s8, %s6
  $region1: #{tpu_custom_call.1} parent=0
    #allocation2 [shape = 'u8[8192]{0}', space=vmem, size = 0x2000, scoped, tag = 'input window, operand 0']
    #allocation3 [shape = 's32[2]{0}', space=sflag, size = 0x8, scoped, tag = 'scoped memory for tpu_custom_call.1']
    #allocation4 [shape = 's32[2]{0}', space=sflag, size = 0x8, scoped, tag = 'scoped memory for tpu_custom_call.1']
    #allocation5 [shape = 'u8[8192]{0}', space=vmem, size = 0x2000, scoped, tag = 'input window, operand 1, single buffered']
    #allocation6 [shape = 's32[1]{0}', space=sflag, size = 0x4, scoped, tag = 'scoped memory for tpu_custom_call.1']
    #allocation7 [shape = 'u8[1024]{0}', space=vmem, size = 0x400, scoped, tag = 'input window, operand 2']
    #allocation8 [shape = 'u8[32768]{0}', space=vmem, size = 0x8000, scoped, tag = 'input window, operand 3, single buffered']
    #allocation9 [shape = 'u8[8192]{0}', space=vmem, size = 0x2000, scoped, tag = 'output window, operand 0']
    %10 = vsyncpa [#allocation3], 0
    %s11 = scalar_lea.sflag [#allocation3], 1
    %12 = vsyncpa %s11, 0
    %13 = vsyncpa [#allocation6], 0
    %14 = vsyncpa [#allocation4], 0
    %s15 = scalar_lea.sflag [#allocation4], 1
    %16 = vsyncpa %s15, 0
    loop: start=0, step=1, limit=4
    $region2: #{tpu_custom_call.1} parent=1 // loop_pre_header
      _
    $region3: #{tpu_custom_call.1} parent=1 // loop_header
      %s18 = sphi 0, %s22
      %p19 = scmp.ge.s32.totalorder %s18, 4
      %s25 = sphi 0, %s37
      %s26 = sphi 0, %s33
      %s27 = sphi 0, %s25
      %s28 = sphi 0, %s26
      %s29 = sphi 0, %s27
      %s30 = sphi 0, %s28
      %s42 = sphi 0, %s44
      %s45 = sphi 0, %s42
      %s46 = sphi 0, %s45
      %s62 = sphi 0, %s46
      %s66 = sphi 0, %s66
      %s68 = sphi 0, %s66
      %s69 = sphi 0, %s68
      %s83 = sphi 0, %s69
      %s89 = sphi 0, %s91
      %s92 = sphi 0, %s89
      %s93 = sphi 0, %s92
      %s109 = sphi 0, %s93
      %s113 = sphi 0, %s113
      %s115 = sphi 0, %s113
      %s116 = sphi 0, %s115
      %s130 = sphi 0, %s116
      %s134 = sphi 0, %s134
      %s136 = sphi 0, %s134
      %s137 = sphi 0, %s136
      %s151 = sphi 0, %s137
      %s159 = sphi 0, %s161
      %s162 = sphi 0, %s159
      %s163 = sphi 0, %s162
      %s179 = sphi 0, %s163
    $region4: #{tpu_custom_call.1} parent=1 // loop_header_branch
      %21 = sbr.rel (%p19) target = $region8
    $region5: #{tpu_custom_call.1} parent=1 // loop_body
      %s23 = ssub.s32 %s18, 1
      %s24 = ssub.s32 %s18, 2
      %s31 = sadd.s32 1, %s26
      %p32 = scmp.ge.s32.totalorder %s31, 1
      %s33 = scalar_select %p32, 0, %s31
      %s34 = sadd.s32 1, %s25
      %s35 = scalar_select %p32, %s34, %s25
      %p36 = scmp.ge.s32.totalorder %s35, 2
      %s37 = scalar_select %p36, 0, %s35
      %s38 = ssub.s32 %s25, %s37
      %s39 = ssub.s32 %s26, %s33
      %s40 = sor.u32 %s38, %s39
      %p41 = scmp.eq.s32.totalorder %s40, 0
      %s43 = sadd.s32 %s42, 1
      %s44 = scalar_select %p41, %s42, %s43
      %p47 = pneg %p41
      %p48 = scmp.eq.s32.totalorder %s18, 1
      %p49 = por %p47, %p48
      %p50 = scmp.ne.s32.totalorder %s42, %s45
      %p51 = scmp.eq.s32.totalorder %s18, 0
      %p52 = por %p50, %p51
      %p53 = scmp.ne.s32.totalorder %s42, %s45
      %p54 = scmp.eq.s32.totalorder %s23, 1
      %p55 = por %p53, %p54
      %p56 = scmp.ne.s32.totalorder %s45, %s46
      %p57 = scmp.eq.s32.totalorder %s23, 0
      %p58 = por %p56, %p57
      %p59 = scmp.ne.s32.totalorder %s45, %s46
      %p60 = scmp.eq.s32.totalorder %s24, 1
      %p61 = por %p59, %p60
      %p63 = scmp.ne.s32.totalorder %s46, %s62
      %p64 = scmp.eq.s32.totalorder %s24, 0
      %p65 = por %p63, %p64
      %s67 = sadd.s32 %s66, 1
      %p70 = scmp.eq.s32.totalorder %s18, 1
      %p71 = scmp.ne.s32.totalorder %s66, %s68
      %p72 = scmp.eq.s32.totalorder %s18, 0
      %p73 = por %p71, %p72
      %p74 = scmp.ne.s32.totalorder %s66, %s68
      %p75 = scmp.eq.s32.totalorder %s23, 1
      %p76 = por %p74, %p75
      %p77 = scmp.ne.s32.totalorder %s68, %s69
      %p78 = scmp.eq.s32.totalorder %s23, 0
      %p79 = por %p77, %p78
      %p80 = scmp.ne.s32.totalorder %s68, %s69
      %p81 = scmp.eq.s32.totalorder %s24, 1
      %p82 = por %p80, %p81
      %p84 = scmp.ne.s32.totalorder %s69, %s83
      %p85 = scmp.eq.s32.totalorder %s24, 0
      %p86 = por %p84, %p85
      %s87 = ssub.s32 %s25, %s37
      %p88 = scmp.eq.s32.totalorder %s87, 0
      %s90 = sadd.s32 %s89, 1
      %s91 = scalar_select %p88, %s89, %s90
      %p94 = pneg %p88
      %p95 = scmp.eq.s32.totalorder %s18, 1
      %p96 = por %p94, %p95
      %p97 = scmp.ne.s32.totalorder %s89, %s92
      %p98 = scmp.eq.s32.totalorder %s18, 0
      %p99 = por %p97, %p98
      %p100 = scmp.ne.s32.totalorder %s89, %s92
      %p101 = scmp.eq.s32.totalorder %s23, 1
      %p102 = por %p100, %p101
      %p103 = scmp.ne.s32.totalorder %s92, %s93
      %p104 = scmp.eq.s32.totalorder %s23, 0
      %p105 = por %p103, %p104
      %p106 = scmp.ne.s32.totalorder %s92, %s93
      %p107 = scmp.eq.s32.totalorder %s24, 1
      %p108 = por %p106, %p107
      %p110 = scmp.ne.s32.totalorder %s93, %s109
      %p111 = scmp.eq.s32.totalorder %s24, 0
      %p112 = por %p110, %p111
      %s114 = sadd.s32 %s113, 1
      %p117 = scmp.eq.s32.totalorder %s18, 1
      %p118 = scmp.ne.s32.totalorder %s113, %s115
      %p119 = scmp.eq.s32.totalorder %s18, 0
      %p120 = por %p118, %p119
      %p121 = scmp.ne.s32.totalorder %s113, %s115
      %p122 = scmp.eq.s32.totalorder %s23, 1
      %p123 = por %p121, %p122
      %p124 = scmp.ne.s32.totalorder %s115, %s116
      %p125 = scmp.eq.s32.totalorder %s23, 0
      %p126 = por %p124, %p125
      %p127 = scmp.ne.s32.totalorder %s115, %s116
      %p128 = scmp.eq.s32.totalorder %s24, 1
      %p129 = por %p127, %p128
      %p131 = scmp.ne.s32.totalorder %s116, %s130
      %p132 = scmp.eq.s32.totalorder %s24, 0
      %p133 = por %p131, %p132
      %s135 = sadd.s32 %s134, 1
      %p138 = scmp.eq.s32.totalorder %s18, 1
      %p139 = scmp.ne.s32.totalorder %s134, %s136
      %p140 = scmp.eq.s32.totalorder %s18, 0
      %p141 = por %p139, %p140
      %p142 = scmp.ne.s32.totalorder %s134, %s136
      %p143 = scmp.eq.s32.totalorder %s23, 1
      %p144 = por %p142, %p143
      %p145 = scmp.ne.s32.totalorder %s136, %s137
      %p146 = scmp.eq.s32.totalorder %s23, 0
      %p147 = por %p145, %p146
      %p148 = scmp.ne.s32.totalorder %s136, %s137
      %p149 = scmp.eq.s32.totalorder %s24, 1
      %p150 = por %p148, %p149
      %p152 = scmp.ne.s32.totalorder %s137, %s151
      %p153 = scmp.eq.s32.totalorder %s24, 0
      %p154 = por %p152, %p153
      %s155 = ssub.s32 %s25, %s37
      %s156 = ssub.s32 %s26, %s33
      %s157 = sor.u32 %s155, %s156
      %p158 = scmp.eq.s32.totalorder %s157, 0
      %s160 = sadd.s32 %s159, 1
      %s161 = scalar_select %p158, %s159, %s160
      %p164 = pneg %p158
      %p165 = scmp.eq.s32.totalorder %s18, 1
      %p166 = por %p164, %p165
      %p167 = scmp.ne.s32.totalorder %s159, %s162
      %p168 = scmp.eq.s32.totalorder %s18, 0
      %p169 = por %p167, %p168
      %p170 = scmp.ne.s32.totalorder %s159, %s162
      %p171 = scmp.eq.s32.totalorder %s23, 1
      %p172 = por %p170, %p171
      %p173 = scmp.ne.s32.totalorder %s162, %s163
      %p174 = scmp.eq.s32.totalorder %s23, 0
      %p175 = por %p173, %p174
      %p176 = scmp.ne.s32.totalorder %s162, %s163
      %p177 = scmp.eq.s32.totalorder %s24, 1
      %p178 = por %p176, %p177
      %p180 = scmp.ne.s32.totalorder %s163, %s179
      %p181 = scmp.eq.s32.totalorder %s24, 0
      %p182 = por %p180, %p181
      %p183 = scmp.le.s32.totalorder 1, %s18
      %p184 = scmp.lt.s32.totalorder %s18, 3
      %p185 = pnand %p183, %p184
      %p186 = pneg %p185
      // Predicated region
      $region9: #{tpu_custom_call.1} parent=5 // pred_check
        _
      $region10: #{tpu_custom_call.1} parent=5 // pred_check_branch
        %188 = sbr.rel (%p185) target = $region12
      $region11: #{tpu_custom_call.1} parent=5 // pred_region
        %s189 = ssub.s32 %s18, 1
        // Predicated region
        $region13: #{tpu_custom_call.1} parent=11 // pred_check
          %p190 = pneg %p79
        $region14: #{tpu_custom_call.1} parent=11 // pred_check_branch
          %192 = sbr.rel (%p190) target = $region16
        $region15: #{tpu_custom_call.1} parent=11 // pred_region
          %194 = vsyncadd [#allocation6], 0
          %s195 = sshll.u32 %s1, 4
          %s196 = int_to_ptr.hbm [resolvable:$true] %s195
          %s197 = sshll.u32 [#allocation5], 4
          %s198 = int_to_ptr.vmem [resolvable:$true] %s197
          %203 = dma.hbm_to_vmem [thread:$0]  %s196, 256, %s198, [#allocation6], 128, 128, 8
        $region16: #{tpu_custom_call.1} parent=11 // pred_fallthru
          _
        // Predicated region
        $region17: #{tpu_custom_call.1} parent=11 // pred_check
          %p204 = pneg %p126
        $region18: #{tpu_custom_call.1} parent=11 // pred_check_branch
          %206 = sbr.rel (%p204) target = $region20
        $region19: #{tpu_custom_call.1} parent=11 // pred_region
          %208 = vsyncadd [#allocation6], 0
          %s209 = sshll.u32 %s3, 4
          %s210 = int_to_ptr.hbm [resolvable:$true] %s209
          %s211 = sshll.u32 [#allocation8], 4
          %s212 = int_to_ptr.vmem [resolvable:$true] %s211
          %217 = dma.hbm_to_vmem [thread:$0]  %s210, 1024, %s212, [#allocation6], 128, 128, 8
        $region20: #{tpu_custom_call.1} parent=11 // pred_fallthru
          _
        // Predicated region
        $region21: #{tpu_custom_call.1} parent=11 // pred_check
          %p218 = pneg %p147
        $region22: #{tpu_custom_call.1} parent=11 // pred_check_branch
          %220 = sbr.rel (%p218) target = $region24
        $region23: #{tpu_custom_call.1} parent=11 // pred_region
          _
        $region24: #{tpu_custom_call.1} parent=11 // pred_fallthru
          _
      $region12: #{tpu_custom_call.1} parent=5 // pred_fallthru
        _
      %p221 = scmp.lt.s32.totalorder %s18, 2
      // Predicated region
      $region25: #{tpu_custom_call.1} parent=5 // pred_check
        %p222 = pneg %p221
      $region26: #{tpu_custom_call.1} parent=5 // pred_check_branch
        %224 = sbr.rel (%p222) target = $region28
      $region27: #{tpu_custom_call.1} parent=5 // pred_region
        // Predicated region
        $region29: #{tpu_custom_call.1} parent=27 // pred_check
          %p225 = pneg %p52
        $region30: #{tpu_custom_call.1} parent=27 // pred_check_branch
          %227 = sbr.rel (%p225) target = $region32
        $region31: #{tpu_custom_call.1} parent=27 // pred_region
          %s228 = sand.u32 %s18, 1
          %s229 = scalar_lea.sflag [#allocation3], %s228
          %s230 = sand.u32 %s42, 1
          %s231 = smul.addr %s230, 8
          %s232 = scalar_lea.vmem [#allocation2], %s231
          %234 = vsyncadd %s229, 0
          %s235 = sadd.s32 %s26, %s25
          %s236 = smul.addr %s235, 8
          %s237 = scalar_lea.hbm %s0, %s236
          %s239 = sshll.u32 %s237, 4
          %s240 = int_to_ptr.hbm [resolvable:$true] %s239
          %s241 = sshll.u32 %s232, 4
          %s242 = int_to_ptr.vmem [resolvable:$true] %s241
          %244 = dma.hbm_to_vmem [thread:$0]  %s240, 128, %s242, %s229
        $region32: #{tpu_custom_call.1} parent=27 // pred_fallthru
          _
        // Predicated region
        $region33: #{tpu_custom_call.1} parent=27 // pred_check
          %p245 = pneg %p99
        $region34: #{tpu_custom_call.1} parent=27 // pred_check_branch
          %247 = sbr.rel (%p245) target = $region36
        $region35: #{tpu_custom_call.1} parent=27 // pred_region
          %s248 = sand.u32 %s18, 1
          %s249 = scalar_lea.sflag [#allocation3], %s248
          %s250 = sand.u32 %s89, 1
          %s251 = scalar_lea.vmem [#allocation7], %s250
          %253 = vsyncadd %s249, 0
          %s254 = scalar_lea.hbm %s2, %s25
          %s256 = sshll.u32 %s254, 4
          %s257 = int_to_ptr.hbm [resolvable:$true] %s256
          %s258 = sshll.u32 %s251, 4
          %s259 = int_to_ptr.vmem [resolvable:$true] %s258
          %261 = dma.hbm_to_vmem [thread:$0]  %s257, 16, %s259, %s249
        $region36: #{tpu_custom_call.1} parent=27 // pred_fallthru
          _
      $region28: #{tpu_custom_call.1} parent=5 // pred_fallthru
        _
      %p262 = scmp.le.s32.totalorder 1, %s18
      %p263 = scmp.lt.s32.totalorder %s18, 3
      %p264 = pnand %p262, %p263
      %p265 = pneg %p264
      // Predicated region
      $region37: #{tpu_custom_call.1} parent=5 // pred_check
        _
      $region38: #{tpu_custom_call.1} parent=5 // pred_check_branch
        %267 = sbr.rel (%p264) target = $region40
      $region39: #{tpu_custom_call.1} parent=5 // pred_region
        %s268 = ssub.s32 %s18, 1
        %s269 = sand.u32 %s23, 1
        %s270 = scalar_lea.sflag [#allocation3], %s269
        %s271 = sand.u32 %s45, 1
        %s272 = smul.addr %s271, 8
        %s273 = scalar_lea.vmem [#allocation2], %s272
        // Predicated region
        $region41: #{tpu_custom_call.1} parent=39 // pred_check
          %p274 = pneg %p58
        $region42: #{tpu_custom_call.1} parent=39 // pred_check_branch
          %276 = sbr.rel (%p274) target = $region44
        $region43: #{tpu_custom_call.1} parent=39 // pred_region
          %278 = dma.done %s270, 128
        $region44: #{tpu_custom_call.1} parent=39 // pred_fallthru
          _
        // Predicated region
        $region45: #{tpu_custom_call.1} parent=39 // pred_check
          %p279 = pneg %p79
        $region46: #{tpu_custom_call.1} parent=39 // pred_check_branch
          %281 = sbr.rel (%p279) target = $region48
        $region47: #{tpu_custom_call.1} parent=39 // pred_region
          %283 = dma.done [#allocation6], 256
        $region48: #{tpu_custom_call.1} parent=39 // pred_fallthru
          _
        %s284 = sand.u32 %s23, 1
        %s285 = scalar_lea.sflag [#allocation3], %s284
        %s286 = sand.u32 %s92, 1
        %s287 = scalar_lea.vmem [#allocation7], %s286
        // Predicated region
        $region49: #{tpu_custom_call.1} parent=39 // pred_check
          %p288 = pneg %p105
        $region50: #{tpu_custom_call.1} parent=39 // pred_check_branch
          %290 = sbr.rel (%p288) target = $region52
        $region51: #{tpu_custom_call.1} parent=39 // pred_region
          %292 = dma.done %s285, 16
        $region52: #{tpu_custom_call.1} parent=39 // pred_fallthru
          _
        // Predicated region
        $region53: #{tpu_custom_call.1} parent=39 // pred_check
          %p293 = pneg %p126
        $region54: #{tpu_custom_call.1} parent=39 // pred_check_branch
          %295 = sbr.rel (%p293) target = $region56
        $region55: #{tpu_custom_call.1} parent=39 // pred_region
          %297 = dma.done [#allocation6], 1024
        $region56: #{tpu_custom_call.1} parent=39 // pred_fallthru
          _
        %s298 = sand.u32 %s23, 1
        %s299 = scalar_lea.sflag [#allocation3], %s298
        %s300 = sand.u32 %s45, 1
        %s301 = smul.addr %s300, 8
        %s302 = scalar_lea.vmem [#allocation2], %s301
        %p303 = pneg %p58
        %p304 = pneg %p55
        %p305 = pneg %p79
        %p306 = pneg %p76
        %s307 = sand.u32 %s23, 1
        %s308 = scalar_lea.sflag [#allocation3], %s307
        %s309 = sand.u32 %s92, 1
        %s310 = scalar_lea.vmem [#allocation7], %s309
        %p311 = pneg %p105
        %p312 = pneg %p102
        %p313 = pneg %p126
        %p314 = pneg %p123
        %p315 = pneg %p147
        %p316 = pneg %p144
        %p317 = pneg %p175
        %p318 = pneg %p172
        %s319 = sand.u32 %s162, 1
        %s320 = scalar_lea.sflag [#allocation4], %s319
        %s321 = sand.u32 %s162, 1
        %s322 = smul.addr %s321, 8
        %s323 = scalar_lea.vmem [#allocation9], %s322
        %v324 = vld [vmem:[%s273] sm:$0xff]
        %v325 = vld [vmem:[#allocation5] sm:$0xff]
        %v326 = vld [vmem:[#allocation5 + $0x8] sm:$0xf]
        %v327 = vld [vmem:[%s287] sm:$0x1]
        %v329 = vperm.slane %v327, 0
        %vm331 = vcmask 97280
        %v333 = vsel %vm331, %v324, 0
        %vm335 = vcmask 1043456
        %v337 = vsel %vm335, %v326, 0
        %339 = vmatpush.msra.mxu0 0.0
        %340 = vmatpush.msra.mxu0 0.0
        %341 = vmatpush.msra.mxu0 0.0
        %342 = vmatpush.msra.mxu0 0.0
        %343 = vmatpush.msra.mxu0 0.0
        %344 = vmatpush.msra.mxu0 0.0
        %345 = vmatpush.msra.mxu0 0.0
        %346 = vmatpush.msra.mxu0 0.0
        %347 = vmatpush.msra.mxu0 0.0
        %348 = vmatpush.msra.mxu0 0.0
        %349 = vmatpush.msra.mxu0 0.0
        %350 = vmatpush.msra.mxu0 0.0
        %351 = vmatpush.msra.mxu0 0.0
        %352 = vmatpush.msra.mxu0 0.0
        %353 = vmatpush.msra.mxu0 %v337
        %354 = vmatpush.msra.mxu0 %v325
        %355 = vmatmul.f32.gmra.mxu0 %v333
        %v356 = vpop.f32.mrf.mxu0
        %v357 = vadd.f32 %v329, %v356
        %358 = vdwg.mxu0
        %vm359 = vcmp.gt.f32.partialorder %v357, 0.0
        %v360 = vmul.f32 %v357, 0.01
        %v361 = vsel %vm359, %v357, %v360
        %v362 = vld [vmem:[#allocation8] sm:$0xff]
        %v363 = vld [vmem:[#allocation8 + $0x8] sm:$0xff]
        %v364 = vld [vmem:[#allocation8 + $0x10] sm:$0xff]
        %v365 = vld [vmem:[#allocation8 + $0x18] sm:$0xff]
        %v366 = vld [vmem:[#allocation8 + $0x20] sm:$0xff]
        %v367 = vld [vmem:[#allocation8 + $0x28] sm:$0xff]
        %v368 = vld [vmem:[#allocation8 + $0x30] sm:$0xff]
        %v369 = vld [vmem:[#allocation8 + $0x38] sm:$0xff]
        %v370 = vld [vmem:[%s4] sm:$0x1]
        %v372 = vperm.slane %v370, 0
        %vm374 = vcmask 523264
        %v376 = vsel %vm374, %v361, 0
        %378 = vmatpush.msra.mxu0 0.0
        %379 = vmatpush.msra.mxu0 0.0
        %380 = vmatpush.msra.mxu0 0.0
        %381 = vmatpush.msra.mxu0 0.0
        %382 = vmatpush.msra.mxu0 0.0
        %383 = vmatpush.msra.mxu0 0.0
        %384 = vmatpush.msra.mxu0 0.0
        %385 = vmatpush.msra.mxu0 0.0
        %386 = vmatpush.msra.mxu0 %v369
        %387 = vmatpush.msra.mxu0 %v368
        %388 = vmatpush.msra.mxu0 %v367
        %389 = vmatpush.msra.mxu0 %v366
        %390 = vmatpush.msra.mxu0 %v365
        %391 = vmatpush.msra.mxu0 %v364
        %392 = vmatpush.msra.mxu0 %v363
        %393 = vmatpush.msra.mxu0 %v362
        %394 = vmatmul.f32.gmra.mxu0 %v376
        %v395 = vpop.f32.mrf.mxu0
        %v396 = vadd.f32 %v372, %v395
        %397 = vdwg.mxu0
        %398 = vst [vmem:[%s323] sm:$0xff] %v396
        %s399 = sand.u32 %s162, 1
        %s400 = scalar_lea.sflag [#allocation4], %s399
        %s401 = sand.u32 %s162, 1
        %s402 = smul.addr %s401, 8
        %s403 = scalar_lea.vmem [#allocation9], %s402
        // Predicated region
        $region57: #{tpu_custom_call.1} parent=39 // pred_check
          %p404 = pneg %p172
        $region58: #{tpu_custom_call.1} parent=39 // pred_check_branch
          %406 = sbr.rel (%p404) target = $region60
        $region59: #{tpu_custom_call.1} parent=39 // pred_region
          %408 = vsyncadd %s400, 0
          %s409 = sadd.s32 %s28, %s27
          %s410 = smul.addr %s409, 8
          %s411 = scalar_lea.hbm %s5, %s410
          %s413 = sshll.u32 %s403, 4
          %s414 = int_to_ptr.vmem [resolvable:$true] %s413
          %s415 = sshll.u32 %s411, 4
          %s416 = int_to_ptr.hbm [resolvable:$true] %s415
          %418 = dma.vmem_to_hbm [thread:$0]  %s414, 128, %s416, %s400
        $region60: #{tpu_custom_call.1} parent=39 // pred_fallthru
          _
      $region40: #{tpu_custom_call.1} parent=5 // pred_fallthru
        _
      %p419 = scmp.le.s32.totalorder 2, %s18
      // Predicated region
      $region61: #{tpu_custom_call.1} parent=5 // pred_check
        %p420 = pneg %p419
      $region62: #{tpu_custom_call.1} parent=5 // pred_check_branch
        %422 = sbr.rel (%p420) target = $region64
      $region63: #{tpu_custom_call.1} parent=5 // pred_region
        %s423 = ssub.s32 %s18, 2
        // Predicated region
        $region65: #{tpu_custom_call.1} parent=63 // pred_check
          %p424 = pneg %p178
        $region66: #{tpu_custom_call.1} parent=63 // pred_check_branch
          %426 = sbr.rel (%p424) target = $region68
        $region67: #{tpu_custom_call.1} parent=63 // pred_region
          %s427 = sand.u32 %s163, 1
          %s428 = scalar_lea.sflag [#allocation4], %s427
          %s429 = sand.u32 %s163, 1
          %s430 = smul.addr %s429, 8
          %s431 = scalar_lea.vmem [#allocation9], %s430
          %433 = dma.done %s428, 128
        $region68: #{tpu_custom_call.1} parent=63 // pred_fallthru
          _
      $region64: #{tpu_custom_call.1} parent=5 // pred_fallthru
        _
    $region6: #{tpu_custom_call.1} parent=1 // loop_footer
      %s22 = sadd.s32 1, %s18
    $region7: #{tpu_custom_call.1} parent=1 // loop_footer_branch
      %17 = sbr.rel target = $region3
    $region8: #{tpu_custom_call.1} parent=1 // loop_exit
      _
    %434 = vsyncpa [#allocation3], 1
    %s435 = scalar_lea.sflag [#allocation3], 1
    %436 = vsyncpa %s435, 1
    %437 = vsyncpa [#allocation6], 1
    %438 = vsyncpa [#allocation4], 1
    %s439 = scalar_lea.sflag [#allocation4], 1
    %440 = vsyncpa %s439, 1

</llo_original>
